<compile_context>
chip_gen: v7x
topology: tpu7x:2x2x1
jax: 0.10.0
libtpu: 0.0.40
codegen_flags: <defaults>
</compile_context>

<pallas_src>
import jax
import jax.numpy as jnp
from jax.experimental import pallas as pl
from jax.experimental.pallas import tpu as pltpu

HIDDEN = 100        # PyTorch hidden size
HIDDEN_PAD = 128    # padded to a full lane tile
NUM_BRANCHES = 4
NEG_SLOPE = 0.2     # matches nn.LeakyReLU(0.2) in the PyTorch module


def _leaky_relu(x, negative_slope=NEG_SLOPE):
    return jnp.where(x > 0, x, negative_slope * x)


def _round_up(n, m):
    return ((n + m - 1) // m) * m


# ---------------------------------------------------------------------------
# Kernel: fused (x @ W1_cat) -> leaky -> (@ W2_blkdiag) -> leaky per batch tile
# ---------------------------------------------------------------------------
def filter_kernel(x_ref, w1_ref, w2_ref, o_ref):
    # matmul 1: bf16 x bf16 -> f32 accumulator (native MXU path).
    h = jnp.dot(x_ref[...], w1_ref[...], preferred_element_type=jnp.float32)
    h = _leaky_relu(h)  # VPU math stays f32 (v5e has no bf16 VALU)
    # matmul 2: cast activations back to bf16 for the MXU, accumulate in f32.
    # TODO(synk): if profiling at large B on v6e/v7x shows the MXU as the binder,
    # replace the 75%-zero block-diagonal with 4 grouped (K=128, N=E) accumulating
    # matmuls into the same lane-dense (tile, 4*E) output.
    y = jnp.dot(h.astype(jnp.bfloat16), w2_ref[...],
                preferred_element_type=jnp.float32)
    y = _leaky_relu(y)
    o_ref[...] = y.astype(o_ref.dtype)


# ---------------------------------------------------------------------------
# Host-side weight packing (done once, outside the kernel)
# ---------------------------------------------------------------------------
def pack_weights(params, dtype=jnp.bfloat16):
    """Pack 8 per-branch weights into W1_cat (E, 4*H_pad) and W2_blkdiag (4*H_pad, 4*E)."""
    E = params["wa1_1"].shape[0]
    w1_list = [params["wa1_1"], params["wb1_1"], params["wa2_1"], params["wb2_1"]]
    w2_list = [params["wa1_2"], params["wb1_2"], params["wa2_2"], params["wb2_2"]]

    w1_cat = jnp.zeros((E, NUM_BRANCHES * HIDDEN_PAD), dtype)
    w2_blk = jnp.zeros((NUM_BRANCHES * HIDDEN_PAD, NUM_BRANCHES * E), dtype)
    for b in range(NUM_BRANCHES):
        w1_cat = w1_cat.at[:, b * HIDDEN_PAD: b * HIDDEN_PAD + HIDDEN].set(
            w1_list[b].astype(dtype))
        w2_blk = w2_blk.at[b * HIDDEN_PAD: b * HIDDEN_PAD + HIDDEN,
                           b * E: (b + 1) * E].set(w2_list[b].astype(dtype))
    return w1_cat, w2_blk


# ---------------------------------------------------------------------------
# Forward wrappers
# ---------------------------------------------------------------------------
def filter_forward_packed(x, w1_cat, w2_blk, *, tile_b=2048):
    """x: (B, E). Returns packed (B, 4*E) = [alpha1 | beta1 | alpha2 | beta2] in bf16."""
    B, E = x.shape
    out_n = NUM_BRANCHES * E
    x = x.astype(w1_cat.dtype)

    # Batch tile: at tile=2048 in bf16 the total VMEM footprint is <10 MiB
    # (the f32 h temp dominates), comfortably under every chip's scoped limit.
    # For B > 1024, cap the tile so there are >= 2 grid steps and the "parallel"
    # batch axis shards across v7x's two TensorCores.
    tile = min(_round_up(tile_b, 8), _round_up(B, 8))
    if B > 1024 and pl.cdiv(B, tile) < 2:
        tile = _round_up(pl.cdiv(B, 2), 8)
    n_tiles = pl.cdiv(B, tile)   # partial last block handled by Pallas masking

    itemsize = jnp.dtype(x.dtype).itemsize
    flops = (2 * B * E * NUM_BRANCHES * HIDDEN_PAD
             + 2 * B * NUM_BRANCHES * HIDDEN_PAD * out_n)
    bytes_accessed = itemsize * (B * E + w1_cat.size + w2_blk.size + B * out_n)

    return pl.pallas_call(
        filter_kernel,
        out_shape=jax.ShapeDtypeStruct((B, out_n), x.dtype),
        grid_spec=pltpu.PrefetchScalarGridSpec(
            num_scalar_prefetch=0,
            grid=(n_tiles,),
            in_specs=[
                # Streaming batch tile.
                # TODO(synk): on v5e, sweep pipeline_mode=pl.Buffered(3) here and
                # on out_specs if the x/out DMAs become exposed at large B.
                pl.BlockSpec((tile, E), lambda i: (i, 0)),
                # Weights stay resident across all batch tiles.
                pl.BlockSpec((E, NUM_BRANCHES * HIDDEN_PAD), lambda i: (0, 0)),
                pl.BlockSpec((NUM_BRANCHES * HIDDEN_PAD, out_n), lambda i: (0, 0)),
            ],
            out_specs=pl.BlockSpec((tile, out_n), lambda i: (i, 0)),
        ),
        compiler_params=pltpu.CompilerParams(
            dimension_semantics=("parallel",),
            vmem_limit_bytes=32 * 1024 * 1024,
        ),
        cost_estimate=pl.CostEstimate(
            flops=flops, transcendentals=0, bytes_accessed=bytes_accessed),
    )(x, w1_cat, w2_blk)


def filter_forward(x, w1_cat, w2_blk, *, tile_b=2048):
    """Returns (alpha1, beta1, alpha2, beta2), each (B, E), matching the PyTorch module.

    Prefer `filter_forward_packed` for downstream consumers inside the same jit to
    avoid re-materializing four sliced copies in HBM.
    """
    B, E = x.shape
    y = filter_forward_packed(x, w1_cat, w2_blk, tile_b=tile_b)
    return (y[:, 0:E], y[:, E:2 * E], y[:, 2 * E:3 * E], y[:, 3 * E:4 * E])


# ---------------------------------------------------------------------------
# Synthetic weights + pure-JAX references (mirror PyTorch semantics)
# ---------------------------------------------------------------------------
def init_params(key, node_embed_size, hidden=HIDDEN, dtype=jnp.float32):
    keys = jax.random.split(key, 8)

    def w(k, fan_in, fan_out):
        bound = 1.0 / jnp.sqrt(fan_in)
        return jax.random.uniform(k, (fan_in, fan_out), dtype, -bound, bound)

    return {
        "wa1_1": w(keys[0], node_embed_size, hidden),
        "wa1_2": w(keys[1], hidden, node_embed_size),
        "wb1_1": w(keys[2], node_embed_size, hidden),
        "wb1_2": w(keys[3], hidden, node_embed_size),
        "wa2_1": w(keys[4], node_embed_size, hidden),
        "wa2_2": w(keys[5], hidden, node_embed_size),
        "wb2_1": w(keys[6], node_embed_size, hidden),
        "wb2_2": w(keys[7], hidden, node_embed_size),
    }


def filter_forward_ref_f32(x, params):
    """Pure f32 reference (exact PyTorch semantics)."""
    def branch(w1, w2):
        return _leaky_relu(_leaky_relu(x @ w1) @ w2)

    return (
        branch(params["wa1_1"], params["wa1_2"]),
        branch(params["wb1_1"], params["wb1_2"]),
        branch(params["wa2_1"], params["wa2_2"]),
        branch(params["wb2_1"], params["wb2_2"]),
    )


def filter_forward_ref_bf16(x, params):
    """Reference that mirrors the kernel's mixed-precision policy."""
    xb = x.astype(jnp.bfloat16).astype(jnp.float32)

    def branch(w1, w2):
        w1b = w1.astype(jnp.bfloat16).astype(jnp.float32)
        w2b = w2.astype(jnp.bfloat16).astype(jnp.float32)
        h = _leaky_relu(xb @ w1b)
        hb = h.astype(jnp.bfloat16).astype(jnp.float32)
        return _leaky_relu(hb @ w2b).astype(jnp.bfloat16)

    return (
        branch(params["wa1_1"], params["wa1_2"]),
        branch(params["wb1_1"], params["wb1_2"]),
        branch(params["wa2_1"], params["wa2_2"]),
        branch(params["wb2_1"], params["wb2_2"]),
    )


if __name__ == "__main__":
    NODE_EMBED_SIZE = 32   # args.node_embed_size
    BATCH = 8

    key = jax.random.PRNGKey(0)
    k_x, k_p, k_x2 = jax.random.split(key, 3)
    x = jax.random.normal(k_x, (BATCH, NODE_EMBED_SIZE), jnp.float32)
    params = init_params(k_p, NODE_EMBED_SIZE)

    # One-time host-side packing (bf16: native MXU path, half the HBM bytes).
    w1_cat, w2_blk = pack_weights(params, dtype=jnp.bfloat16)

    outs = jax.block_until_ready(filter_forward(x, w1_cat, w2_blk))
    refs_bf16 = jax.block_until_ready(filter_forward_ref_bf16(x, params))
    refs_f32 = jax.block_until_ready(filter_forward_ref_f32(x, params))

    for o, rb, rf in zip(outs, refs_bf16, refs_f32):
        assert o.shape == (BATCH, NODE_EMBED_SIZE)
        assert o.dtype == jnp.bfloat16
        # Tight-ish check vs the mixed-precision reference (same bf16 policy).
        assert jnp.allclose(o.astype(jnp.float32), rb.astype(jnp.float32),
                            atol=2e-2, rtol=2e-2)
        # Loose check vs exact f32 semantics (expected bf16 precision loss).
        assert jnp.allclose(o.astype(jnp.float32), rf, atol=1e-1, rtol=1e-1)

    # Exercise the uneven-batch path (grid block overhangs B; no padding done).
    B2 = 37
    x2 = jax.random.normal(k_x2, (B2, NODE_EMBED_SIZE), jnp.float32)
    outs2 = jax.block_until_ready(filter_forward(x2, w1_cat, w2_blk))
    refs2 = jax.block_until_ready(filter_forward_ref_f32(x2, params))
    for o, rf in zip(outs2, refs2):
        assert o.shape == (B2, NODE_EMBED_SIZE)
        assert jnp.allclose(o.astype(jnp.float32), rf, atol=1e-1, rtol=1e-1)

    print("KERNEL_OK")
</pallas_src>

<mosaic_0001>
module attributes {stable_mosaic.version = 11 : i64} {
  func.func @filter_kernel(%arg0: i32, %arg1: memref<8x32xbf16, #tpu.memory_space<vmem>>, %arg2: memref<32x512xbf16, #tpu.memory_space<vmem>>, %arg3: memref<512x128xbf16, #tpu.memory_space<vmem>>, %arg4: memref<8x128xbf16, #tpu.memory_space<vmem>>) attributes {dimension_semantics = [#tpu.dimension_semantics<parallel>], iteration_bounds = array<i64: 1>, scalar_prefetch = 0 : i64, scratch_operands = 0 : i64, tpu.core_type = #tpu.core_type<tc>, window_params = [{transform_indices = @transform_0, window_bounds = array<i64: 8, 32>}, {pipeline_mode = #tpu.pipeline_mode<synchronous>, transform_indices = @transform_1, window_bounds = array<i64: 32, 512>}, {pipeline_mode = #tpu.pipeline_mode<synchronous>, transform_indices = @transform_2, window_bounds = array<i64: 512, 128>}, {transform_indices = @transform_3, window_bounds = array<i64: 8, 128>}]} {
    %c0 = arith.constant 0 : index
    %c0_0 = arith.constant 0 : index
    %0 = vector.load %arg1[%c0, %c0_0] : memref<8x32xbf16, #tpu.memory_space<vmem>>, vector<8x32xbf16>
    %c0_1 = arith.constant 0 : index
    %c0_2 = arith.constant 0 : index
    %1 = vector.load %arg2[%c0_1, %c0_2] : memref<32x512xbf16, #tpu.memory_space<vmem>>, vector<32x512xbf16>
    %cst = arith.constant dense<0.000000e+00> : vector<8x512xf32>
    %2 = tpu.matmul %0, %1, %cst {dimension_numbers = #tpu.dot_dimension_numbers<[1], [0], [0], [1], [0, 0, 1, 1], [], []>} : vector<8x32xbf16>, vector<32x512xbf16>, vector<8x512xf32> -> vector<8x512xf32>
    %cst_3 = arith.constant 0.000000e+00 : f32
    %3 = vector.broadcast %cst_3 : f32 to vector<8x512xf32>
    %4 = arith.cmpf ogt, %2, %3 : vector<8x512xf32>
    %cst_4 = arith.constant 2.000000e-01 : f32
    %5 = vector.broadcast %cst_4 : f32 to vector<8x512xf32>
    %6 = arith.mulf %5, %2 : vector<8x512xf32>
    %7 = arith.select %4, %2, %6 : vector<8x512xi1>, vector<8x512xf32>
    %8 = arith.truncf %7 : vector<8x512xf32> to vector<8x512xbf16>
    %c0_5 = arith.constant 0 : index
    %c0_6 = arith.constant 0 : index
    %9 = vector.load %arg3[%c0_5, %c0_6] : memref<512x128xbf16, #tpu.memory_space<vmem>>, vector<512x128xbf16>
    %cst_7 = arith.constant dense<0.000000e+00> : vector<8x128xf32>
    %10 = tpu.matmul %8, %9, %cst_7 {dimension_numbers = #tpu.dot_dimension_numbers<[1], [0], [0], [1], [0, 0, 1, 1], [], []>} : vector<8x512xbf16>, vector<512x128xbf16>, vector<8x128xf32> -> vector<8x128xf32>
    %cst_8 = arith.constant 0.000000e+00 : f32
    %11 = vector.broadcast %cst_8 : f32 to vector<8x128xf32>
    %12 = arith.cmpf ogt, %10, %11 : vector<8x128xf32>
    %cst_9 = arith.constant 2.000000e-01 : f32
    %13 = vector.broadcast %cst_9 : f32 to vector<8x128xf32>
    %14 = arith.mulf %13, %10 : vector<8x128xf32>
    %15 = arith.select %12, %10, %14 : vector<8x128xi1>, vector<8x128xf32>
    %16 = arith.truncf %15 : vector<8x128xf32> to vector<8x128xbf16>
    %c0_10 = arith.constant 0 : index
    %c0_11 = arith.constant 0 : index
    %17 = vector.load %arg4[%c0_10, %c0_11] : memref<8x128xbf16, #tpu.memory_space<vmem>>, vector<8x128xbf16>
    tpu.vector_store %arg4[%c0_10, %c0_11], %16 {strides = array<i32>} : memref<8x128xbf16, #tpu.memory_space<vmem>>, vector<8x128xbf16>,
    return
  }
  func.func @transform_0(%arg0: i32) -> (i32, i32) {
    %c0_i32 = arith.constant 0 : i32
    %c0_i32_0 = arith.constant 0 : i32
    return %arg0, %c0_i32 : i32, i32
  }
  func.func @transform_1(%arg0: i32) -> (i32, i32) {
    %c0_i32 = arith.constant 0 : i32
    %c0_i32_0 = arith.constant 0 : i32
    %c0_i32_1 = arith.constant 0 : i32
    return %c0_i32, %c0_i32_0 : i32, i32
  }
  func.func @transform_2(%arg0: i32) -> (i32, i32) {
    %c0_i32 = arith.constant 0 : i32
    %c0_i32_0 = arith.constant 0 : i32
    %c0_i32_1 = arith.constant 0 : i32
    return %c0_i32, %c0_i32_0 : i32, i32
  }
  func.func @transform_3(%arg0: i32) -> (i32, i32) {
    %c0_i32 = arith.constant 0 : i32
    %c0_i32_0 = arith.constant 0 : i32
    return %arg0, %c0_i32 : i32, i32
  }
}

</mosaic_0001>

<llo_original>
// kernel: tpu_custom_call.1
$region0: #{tpu_custom_call.1}
  #allocation0 [shape = 'u32[]', space=smem, size = 0x4, offset = 0x4, fixed_abs, tag = 'smem constant byte address 0x4 - core index']
  #allocation1 [shape = 'u32[144,128]{1,0:T(1,128)}', space=vmem, size = 0x12000, scoped, tag = 'internal scratch']
  %s0 = inlined_call_operand.hbm [shape: bf16[8,32], index: 0, kind: input, shape index: {}]
  %s1 = inlined_call_operand.hbm [shape: bf16[32,512], index: 1, kind: input, shape index: {}]
  %s2 = inlined_call_operand.hbm [shape: bf16[512,128], index: 2, kind: input, shape index: {}]
  %s3 = inlined_call_operand.hbm [shape: bf16[8,128], index: 3, kind: output, shape index: {}]
  %s4 = sld [smem:[#allocation0]]
  $region34: #{tpu_custom_call.1} parent=0
    _
  %s6 = ssub.s32 1, %s4
  %s7 = scalar_select 0, %s6, %s4
  $region1: #{tpu_custom_call.1} parent=0
    #allocation2 [shape = 'u8[2048]{0}', space=vmem, size = 0x800, scoped, tag = 'input window, operand 0, single buffered']
    #allocation3 [shape = 's32[1]{0}', space=sflag, size = 0x4, scoped, tag = 'scoped memory for tpu_custom_call.1']
    #allocation4 [shape = 's32[1]{0}', space=sflag, size = 0x4, scoped, tag = 'scoped memory for tpu_custom_call.1']
    #allocation5 [shape = 'u8[32768]{0}', space=vmem, size = 0x8000, scoped, tag = 'input window, operand 1, single buffered']
    #allocation6 [shape = 's32[1]{0}', space=sflag, size = 0x4, scoped, tag = 'scoped memory for tpu_custom_call.1']
    #allocation7 [shape = 'u8[131072]{0}', space=vmem, size = 0x20000, scoped, tag = 'input window, operand 2, single buffered']
    #allocation8 [shape = 'u8[2048]{0}', space=vmem, size = 0x800, scoped, tag = 'output window, operand 0, single buffered']
    %8 = vsyncpa [#allocation3], 0
    %9 = vsyncpa [#allocation6], 0
    %10 = vsyncpa [#allocation4], 0
    // Predicated region
    $region2: #{tpu_custom_call.1} parent=1 // pred_check
      _
    $region3: #{tpu_custom_call.1} parent=1 // pred_check_branch
      %12 = sbr.rel (0) target = $region5
    $region4: #{tpu_custom_call.1} parent=1 // pred_region
      %s14 = ssub.s32 64, 64
      %15 = vsyncadd [#allocation3], %s14
      %s17 = sshll.u32 [#allocation2], 4
      %s18 = int_to_ptr.vmem [resolvable:$true] %s17
      %20 = dma.hbm_to_vmem [thread:$0]  %s0, 64, %s18, [#allocation3]
    $region5: #{tpu_custom_call.1} parent=1 // pred_fallthru
      _
    // Predicated region
    $region6: #{tpu_custom_call.1} parent=1 // pred_check
      _
    $region7: #{tpu_custom_call.1} parent=1 // pred_check_branch
      %22 = sbr.rel (0) target = $region9
    $region8: #{tpu_custom_call.1} parent=1 // pred_region
      %s24 = ssub.s32 1024, 1024
      %25 = vsyncadd [#allocation6], %s24
      %s26 = sshll.u32 [#allocation5], 4
      %s27 = int_to_ptr.vmem [resolvable:$true] %s26
      %32 = dma.hbm_to_vmem [thread:$0]  %s1, 1024, %s27, [#allocation6], 256, 256, 16
    $region9: #{tpu_custom_call.1} parent=1 // pred_fallthru
      _
    // Predicated region
    $region10: #{tpu_custom_call.1} parent=1 // pred_check
      _
    $region11: #{tpu_custom_call.1} parent=1 // pred_check_branch
      %34 = sbr.rel (0) target = $region13
    $region12: #{tpu_custom_call.1} parent=1 // pred_region
      %s36 = ssub.s32 4096, 4096
      %37 = vsyncadd [#allocation6], %s36
      %s38 = sshll.u32 [#allocation7], 4
      %s39 = int_to_ptr.vmem [resolvable:$true] %s38
      %44 = dma.hbm_to_vmem [thread:$0]  %s2, 4096, %s39, [#allocation6], 64, 64, 4
    $region13: #{tpu_custom_call.1} parent=1 // pred_fallthru
      _
    // Predicated region
    $region14: #{tpu_custom_call.1} parent=1 // pred_check
      _
    $region15: #{tpu_custom_call.1} parent=1 // pred_check_branch
      %46 = sbr.rel (0) target = $region17
    $region16: #{tpu_custom_call.1} parent=1 // pred_region
      %47 = dma.done [#allocation3], 64
    $region17: #{tpu_custom_call.1} parent=1 // pred_fallthru
      _
    // Predicated region
    $region18: #{tpu_custom_call.1} parent=1 // pred_check
      _
    $region19: #{tpu_custom_call.1} parent=1 // pred_check_branch
      %49 = sbr.rel (0) target = $region21
    $region20: #{tpu_custom_call.1} parent=1 // pred_region
      %50 = dma.done [#allocation6], 1024
    $region21: #{tpu_custom_call.1} parent=1 // pred_fallthru
      _
    // Predicated region
    $region22: #{tpu_custom_call.1} parent=1 // pred_check
      _
    $region23: #{tpu_custom_call.1} parent=1 // pred_check_branch
      %52 = sbr.rel (0) target = $region25
    $region24: #{tpu_custom_call.1} parent=1 // pred_region
      %53 = dma.done [#allocation6], 4096
    $region25: #{tpu_custom_call.1} parent=1 // pred_fallthru
      _
    %v55 = vld [vmem:[#allocation2] sm:$0xf]
    %v56 = vld [vmem:[#allocation5] sm:$0xff]
    %v57 = vld [vmem:[#allocation5 + $0x8] sm:$0xff]
    %v58 = vld [vmem:[#allocation5 + $0x10] sm:$0xff]
    %v59 = vld [vmem:[#allocation5 + $0x18] sm:$0xff]
    %v60 = vld [vmem:[#allocation5 + $0x20] sm:$0xff]
    %v61 = vld [vmem:[#allocation5 + $0x28] sm:$0xff]
    %v62 = vld [vmem:[#allocation5 + $0x30] sm:$0xff]
    %v63 = vld [vmem:[#allocation5 + $0x38] sm:$0xff]
    %v72 = vunpack.c.l.b16 %v56
    %v73 = vunpack.c.h.b16 %v56
    %v74 = vunpack.c.l.b16 %v57
    %v75 = vunpack.c.h.b16 %v57
    %v76 = vunpack.c.l.b16 %v58
    %v77 = vunpack.c.h.b16 %v58
    %v78 = vunpack.c.l.b16 %v59
    %v79 = vunpack.c.h.b16 %v59
    %v80 = vunpack.c.l.b16 %v60
    %v81 = vunpack.c.h.b16 %v60
    %v82 = vunpack.c.l.b16 %v61
    %v83 = vunpack.c.h.b16 %v61
    %v84 = vunpack.c.l.b16 %v62
    %v85 = vunpack.c.h.b16 %v62
    %v86 = vunpack.c.l.b16 %v63
    %v87 = vunpack.c.h.b16 %v63
    %v88 = vpack.c.b16 %v76, %v72
    %v89 = vpack.c.b16 %v77, %v73
    %v90 = vpack.c.b16 %v78, %v74
    %v91 = vpack.c.b16 %v79, %v75
    %v92 = vpack.c.b16 %v84, %v80
    %v93 = vpack.c.b16 %v85, %v81
    %v94 = vpack.c.b16 %v86, %v82
    %v95 = vpack.c.b16 %v87, %v83
    %vm104 = vcmask 261120
    %v106 = vsel %vm104, %v55, 0
    %108 = vmatprep.subr.bf16.mxu0 %v89
    %109 = vmatpush1.bf16.msra.mxu0 %v88
    %110 = vmatprep.subr.bf16.mxu0 %v93
    %111 = vmatpush1.bf16.msra.mxu0 %v92
    %112 = vmatprep.subr.bf16.mxu0 0
    %113 = vmatpush1.bf16.msra.mxu0 0
    %114 = vmatprep.subr.bf16.mxu0 0
    %115 = vmatpush1.bf16.msra.mxu0 0
    %116 = vmatprep.subr.bf16.mxu0 0
    %117 = vmatpush1.bf16.msra.mxu0 0
    %118 = vmatprep.subr.bf16.mxu0 0
    %119 = vmatpush1.bf16.msra.mxu0 0
    %120 = vmatprep.subr.bf16.mxu0 0
    %121 = vmatpush1.bf16.msra.mxu0 0
    %122 = vmatprep.subr.bf16.mxu0 0
    %123 = vmatpush1.bf16.msra.mxu0 0
    %124 = vmatprep.subr.bf16.mxu0 0
    %125 = vmatpush1.bf16.msra.mxu0 0
    %126 = vmatprep.subr.bf16.mxu0 0
    %127 = vmatpush1.bf16.msra.mxu0 0
    %128 = vmatprep.subr.bf16.mxu0 0
    %129 = vmatpush1.bf16.msra.mxu0 0
    %130 = vmatprep.subr.bf16.mxu0 0
    %131 = vmatpush1.bf16.msra.mxu0 0
    %132 = vmatprep.subr.bf16.mxu0 0
    %133 = vmatpush1.bf16.msra.mxu0 0
    %134 = vmatprep.subr.bf16.mxu0 0
    %135 = vmatpush1.bf16.msra.mxu0 0
    %136 = vmatprep.subr.bf16.mxu0 0
    %137 = vmatpush1.bf16.msra.mxu0 0
    %138 = vmatprep.subr.bf16.mxu0 0
    %139 = vmatpush1.bf16.msra.mxu0 0
    %140 = vmatprep.mubr.bf16.mxu0 0
    %141 = vmatmul.mubr.bf16.gmra.mrb[0].mxu0 %v106
    %v142 = vpop.f32.mrb[0].mxu0
    %v143 = vadd.f32 0.0, %v142
    %v144 = vpop.f32.mrb[0].mxu0
    %v145 = vadd.f32 0.0, %v144
    %v146 = vpop.f32.mrb[0].mxu0
    %v147 = vpop.f32.mrb[0].mxu0
    %148 = vdwg.mxu0
    %149 = vmatprep.subr.bf16.mxu0 %v91
    %150 = vmatpush1.bf16.msra.mxu0 %v90
    %151 = vmatprep.subr.bf16.mxu0 %v95
    %152 = vmatpush1.bf16.msra.mxu0 %v94
    %153 = vmatprep.subr.bf16.mxu0 0
    %154 = vmatpush1.bf16.msra.mxu0 0
    %155 = vmatprep.subr.bf16.mxu0 0
    %156 = vmatpush1.bf16.msra.mxu0 0
    %157 = vmatprep.subr.bf16.mxu0 0
    %158 = vmatpush1.bf16.msra.mxu0 0
    %159 = vmatprep.subr.bf16.mxu0 0
    %160 = vmatpush1.bf16.msra.mxu0 0
    %161 = vmatprep.subr.bf16.mxu0 0
    %162 = vmatpush1.bf16.msra.mxu0 0
    %163 = vmatprep.subr.bf16.mxu0 0
    %164 = vmatpush1.bf16.msra.mxu0 0
    %165 = vmatprep.subr.bf16.mxu0 0
    %166 = vmatpush1.bf16.msra.mxu0 0
    %167 = vmatprep.subr.bf16.mxu0 0
    %168 = vmatpush1.bf16.msra.mxu0 0
    %169 = vmatprep.subr.bf16.mxu0 0
    %170 = vmatpush1.bf16.msra.mxu0 0
    %171 = vmatprep.subr.bf16.mxu0 0
    %172 = vmatpush1.bf16.msra.mxu0 0
    %173 = vmatprep.subr.bf16.mxu0 0
    %174 = vmatpush1.bf16.msra.mxu0 0
    %175 = vmatprep.subr.bf16.mxu0 0
    %176 = vmatpush1.bf16.msra.mxu0 0
    %177 = vmatprep.subr.bf16.mxu0 0
    %178 = vmatpush1.bf16.msra.mxu0 0
    %179 = vmatprep.subr.bf16.mxu0 0
    %180 = vmatpush1.bf16.msra.mxu0 0
    %181 = vmatprep.mubr.bf16.mxu0 0
    %182 = vmatmul.mubr.bf16.gmra.mrb[0].mxu0 %v106
    %v183 = vpop.f32.mrb[0].mxu0
    %v184 = vadd.f32 0.0, %v183
    %v185 = vpop.f32.mrb[0].mxu0
    %v186 = vadd.f32 0.0, %v185
    %v187 = vpop.f32.mrb[0].mxu0
    %v188 = vpop.f32.mrb[0].mxu0
    %189 = vdwg.mxu0
    %vm190 = vcmp.gt.f32.partialorder %v143, 0.0
    %vm191 = vcmp.gt.f32.partialorder %v145, 0.0
    %vm192 = vcmp.gt.f32.partialorder %v184, 0.0
    %vm193 = vcmp.gt.f32.partialorder %v186, 0.0
    %v194 = vmul.f32 %v143, 0.2
    %v195 = vmul.f32 %v145, 0.2
    %v196 = vmul.f32 %v184, 0.2
    %v197 = vmul.f32 %v186, 0.2
    %v198 = vsel %vm190, %v143, %v194
    %v199 = vsel %vm191, %v145, %v195
    %v200 = vsel %vm192, %v184, %v196
    %v201 = vsel %vm193, %v186, %v197
    %v202 = vpack.c.bf16 %v198, %v198
    %v203 = vpack.c.bf16 %v199, %v199
    %v204 = vpack.c.bf16 %v200, %v200
    %v205 = vpack.c.bf16 %v201, %v201
    %v206 = vld [vmem:[#allocation7] sm:$0xf]
    %v207 = vld [vmem:[#allocation7 + $0x4] sm:$0xf]
    %v208 = vld [vmem:[#allocation7 + $0x8] sm:$0xf]
    %v209 = vld [vmem:[#allocation7 + $0xc] sm:$0xf]
    %v210 = vld [vmem:[#allocation7 + $0x10] sm:$0xf]
    %v211 = vld [vmem:[#allocation7 + $0x14] sm:$0xf]
    %v212 = vld [vmem:[#allocation7 + $0x18] sm:$0xf]
    %v213 = vld [vmem:[#allocation7 + $0x1c] sm:$0xf]
    %v214 = vld [vmem:[#allocation7 + $0x20] sm:$0xf]
    %v215 = vld [vmem:[#allocation7 + $0x24] sm:$0xf]
    %v216 = vld [vmem:[#allocation7 + $0x28] sm:$0xf]
    %v217 = vld [vmem:[#allocation7 + $0x2c] sm:$0xf]
    %v218 = vld [vmem:[#allocation7 + $0x30] sm:$0xf]
    %v219 = vld [vmem:[#allocation7 + $0x34] sm:$0xf]
    %v220 = vld [vmem:[#allocation7 + $0x38] sm:$0xf]
    %v221 = vld [vmem:[#allocation7 + $0x3c] sm:$0xf]
    %v222 = vld [vmem:[#allocation7 + $0x40] sm:$0xf]
    %v223 = vld [vmem:[#allocation7 + $0x44] sm:$0xf]
    %v224 = vld [vmem:[#allocation7 + $0x48] sm:$0xf]
    %v225 = vld [vmem:[#allocation7 + $0x4c] sm:$0xf]
    %v226 = vld [vmem:[#allocation7 + $0x50] sm:$0xf]
    %v227 = vld [vmem:[#allocation7 + $0x54] sm:$0xf]
    %v228 = vld [vmem:[#allocation7 + $0x58] sm:$0xf]
    %v229 = vld [vmem:[#allocation7 + $0x5c] sm:$0xf]
    %v230 = vld [vmem:[#allocation7 + $0x60] sm:$0xf]
    %v231 = vld [vmem:[#allocation7 + $0x64] sm:$0xf]
    %v232 = vld [vmem:[#allocation7 + $0x68] sm:$0xf]
    %v233 = vld [vmem:[#allocation7 + $0x6c] sm:$0xf]
    %v234 = vld [vmem:[#allocation7 + $0x70] sm:$0xf]
    %v235 = vld [vmem:[#allocation7 + $0x74] sm:$0xf]
    %v236 = vld [vmem:[#allocation7 + $0x78] sm:$0xf]
    %v237 = vld [vmem:[#allocation7 + $0x7c] sm:$0xf]
    %v238 = vld [vmem:[#allocation7 + $0x80] sm:$0xf]
    %v239 = vld [vmem:[#allocation7 + $0x84] sm:$0xf]
    %v240 = vld [vmem:[#allocation7 + $0x88] sm:$0xf]
    %v241 = vld [vmem:[#allocation7 + $0x8c] sm:$0xf]
    %v242 = vld [vmem:[#allocation7 + $0x90] sm:$0xf]
    %v243 = vld [vmem:[#allocation7 + $0x94] sm:$0xf]
    %v244 = vld [vmem:[#allocation7 + $0x98] sm:$0xf]
    %v245 = vld [vmem:[#allocation7 + $0x9c] sm:$0xf]
    %v246 = vld [vmem:[#allocation7 + $0xa0] sm:$0xf]
    %v247 = vld [vmem:[#allocation7 + $0xa4] sm:$0xf]
    %v248 = vld [vmem:[#allocation7 + $0xa8] sm:$0xf]
    %v249 = vld [vmem:[#allocation7 + $0xac] sm:$0xf]
    %v250 = vld [vmem:[#allocation7 + $0xb0] sm:$0xf]
    %v251 = vld [vmem:[#allocation7 + $0xb4] sm:$0xf]
    %v252 = vld [vmem:[#allocation7 + $0xb8] sm:$0xf]
    %v253 = vld [vmem:[#allocation7 + $0xbc] sm:$0xf]
    %v254 = vld [vmem:[#allocation7 + $0xc0] sm:$0xf]
    %v255 = vld [vmem:[#allocation7 + $0xc4] sm:$0xf]
    %v256 = vld [vmem:[#allocation7 + $0xc8] sm:$0xf]
    %v257 = vld [vmem:[#allocation7 + $0xcc] sm:$0xf]
    %v258 = vld [vmem:[#allocation7 + $0xd0] sm:$0xf]
    %v259 = vld [vmem:[#allocation7 + $0xd4] sm:$0xf]
    %v260 = vld [vmem:[#allocation7 + $0xd8] sm:$0xf]
    %v261 = vld [vmem:[#allocation7 + $0xdc] sm:$0xf]
    %v262 = vld [vmem:[#allocation7 + $0xe0] sm:$0xf]
    %v263 = vld [vmem:[#allocation7 + $0xe4] sm:$0xf]
    %v264 = vld [vmem:[#allocation7 + $0xe8] sm:$0xf]
    %v265 = vld [vmem:[#allocation7 + $0xec] sm:$0xf]
    %v266 = vld [vmem:[#allocation7 + $0xf0] sm:$0xf]
    %v267 = vld [vmem:[#allocation7 + $0xf4] sm:$0xf]
    %v268 = vld [vmem:[#allocation7 + $0xf8] sm:$0xf]
    %v269 = vld [vmem:[#allocation7 + $0xfc] sm:$0xf]
    %v334 = vunpack.c.l.b16 %v206
    %v335 = vunpack.c.l.b16 %v207
    %v336 = vunpack.c.l.b16 %v208
    %v337 = vunpack.c.l.b16 %v209
    %v338 = vunpack.c.l.b16 %v210
    %v339 = vunpack.c.l.b16 %v211
    %v340 = vunpack.c.l.b16 %v212
    %v341 = vunpack.c.l.b16 %v213
    %v342 = vunpack.c.l.b16 %v214
    %v343 = vunpack.c.l.b16 %v215
    %v344 = vunpack.c.l.b16 %v216
    %v345 = vunpack.c.l.b16 %v217
    %v346 = vunpack.c.l.b16 %v218
    %v347 = vunpack.c.l.b16 %v219
    %v348 = vunpack.c.l.b16 %v220
    %v349 = vunpack.c.l.b16 %v221
    %v350 = vunpack.c.l.b16 %v222
    %v351 = vunpack.c.l.b16 %v223
    %v352 = vunpack.c.l.b16 %v224
    %v353 = vunpack.c.l.b16 %v225
    %v354 = vunpack.c.l.b16 %v226
    %v355 = vunpack.c.l.b16 %v227
    %v356 = vunpack.c.l.b16 %v228
    %v357 = vunpack.c.l.b16 %v229
    %v358 = vunpack.c.l.b16 %v230
    %v359 = vunpack.c.l.b16 %v231
    %v360 = vunpack.c.l.b16 %v232
    %v361 = vunpack.c.l.b16 %v233
    %v362 = vunpack.c.l.b16 %v234
    %v363 = vunpack.c.l.b16 %v235
    %v364 = vunpack.c.l.b16 %v236
    %v365 = vunpack.c.l.b16 %v237
    %v366 = vunpack.c.l.b16 %v238
    %v367 = vunpack.c.l.b16 %v239
    %v368 = vunpack.c.l.b16 %v240
    %v369 = vunpack.c.l.b16 %v241
    %v370 = vunpack.c.l.b16 %v242
    %v371 = vunpack.c.l.b16 %v243
    %v372 = vunpack.c.l.b16 %v244
    %v373 = vunpack.c.l.b16 %v245
    %v374 = vunpack.c.l.b16 %v246
    %v375 = vunpack.c.l.b16 %v247
    %v376 = vunpack.c.l.b16 %v248
    %v377 = vunpack.c.l.b16 %v249
    %v378 = vunpack.c.l.b16 %v250
    %v379 = vunpack.c.l.b16 %v251
    %v380 = vunpack.c.l.b16 %v252
    %v381 = vunpack.c.l.b16 %v253
    %v382 = vunpack.c.l.b16 %v254
    %v383 = vunpack.c.l.b16 %v255
    %v384 = vunpack.c.l.b16 %v256
    %v385 = vunpack.c.l.b16 %v257
    %v386 = vunpack.c.l.b16 %v258
    %v387 = vunpack.c.l.b16 %v259
    %v388 = vunpack.c.l.b16 %v260
    %v389 = vunpack.c.l.b16 %v261
    %v390 = vunpack.c.l.b16 %v262
    %v391 = vunpack.c.l.b16 %v263
    %v392 = vunpack.c.l.b16 %v264
    %v393 = vunpack.c.l.b16 %v265
    %v394 = vunpack.c.l.b16 %v266
    %v395 = vunpack.c.l.b16 %v267
    %v396 = vunpack.c.l.b16 %v268
    %v397 = vunpack.c.l.b16 %v269
    %v398 = vpack.c.b16 %v335, %v334
    %v399 = vpack.c.b16 %v337, %v336
    %v400 = vpack.c.b16 %v339, %v338
    %v401 = vpack.c.b16 %v341, %v340
    %v402 = vpack.c.b16 %v343, %v342
    %v403 = vpack.c.b16 %v345, %v344
    %v404 = vpack.c.b16 %v347, %v346
    %v405 = vpack.c.b16 %v349, %v348
    %v406 = vpack.c.b16 %v351, %v350
    %v407 = vpack.c.b16 %v353, %v352
    %v408 = vpack.c.b16 %v355, %v354
    %v409 = vpack.c.b16 %v357, %v356
    %v410 = vpack.c.b16 %v359, %v358
    %v411 = vpack.c.b16 %v361, %v360
    %v412 = vpack.c.b16 %v363, %v362
    %v413 = vpack.c.b16 %v365, %v364
    %v414 = vpack.c.b16 %v367, %v366
    %v415 = vpack.c.b16 %v369, %v368
    %v416 = vpack.c.b16 %v371, %v370
    %v417 = vpack.c.b16 %v373, %v372
    %v418 = vpack.c.b16 %v375, %v374
    %v419 = vpack.c.b16 %v377, %v376
    %v420 = vpack.c.b16 %v379, %v378
    %v421 = vpack.c.b16 %v381, %v380
    %v422 = vpack.c.b16 %v383, %v382
    %v423 = vpack.c.b16 %v385, %v384
    %v424 = vpack.c.b16 %v387, %v386
    %v425 = vpack.c.b16 %v389, %v388
    %v426 = vpack.c.b16 %v391, %v390
    %v427 = vpack.c.b16 %v393, %v392
    %v428 = vpack.c.b16 %v395, %v394
    %v429 = vpack.c.b16 %v397, %v396
    %462 = vmatprep.subr.bf16.mxu0 0
    %463 = vmatpush1.bf16.msra.mxu0 %v398
    %464 = vmatprep.subr.bf16.mxu0 0
    %465 = vmatpush1.bf16.msra.mxu0 %v399
    %466 = vmatprep.subr.bf16.mxu0 0
    %467 = vmatpush1.bf16.msra.mxu0 %v400
    %468 = vmatprep.subr.bf16.mxu0 0
    %469 = vmatpush1.bf16.msra.mxu0 %v401
    %470 = vmatprep.subr.bf16.mxu0 0
    %471 = vmatpush1.bf16.msra.mxu0 %v402
    %472 = vmatprep.subr.bf16.mxu0 0
    %473 = vmatpush1.bf16.msra.mxu0 %v403
    %474 = vmatprep.subr.bf16.mxu0 0
    %475 = vmatpush1.bf16.msra.mxu0 %v404
    %476 = vmatprep.subr.bf16.mxu0 0
    %477 = vmatpush1.bf16.msra.mxu0 %v405
    %478 = vmatprep.subr.bf16.mxu0 0
    %479 = vmatpush1.bf16.msra.mxu0 %v406
    %480 = vmatprep.subr.bf16.mxu0 0
    %481 = vmatpush1.bf16.msra.mxu0 %v407
    %482 = vmatprep.subr.bf16.mxu0 0
    %483 = vmatpush1.bf16.msra.mxu0 %v408
    %484 = vmatprep.subr.bf16.mxu0 0
    %485 = vmatpush1.bf16.msra.mxu0 %v409
    %486 = vmatprep.subr.bf16.mxu0 0
    %487 = vmatpush1.bf16.msra.mxu0 %v410
    %488 = vmatprep.subr.bf16.mxu0 0
    %489 = vmatpush1.bf16.msra.mxu0 %v411
    %490 = vmatprep.subr.bf16.mxu0 0
    %491 = vmatpush1.bf16.msra.mxu0 %v412
    %492 = vmatprep.subr.bf16.mxu0 0
    %493 = vmatpush1.bf16.msra.mxu0 %v413
    %494 = vmatprep.mubr.bf16.mxu0 %v203
    %495 = vmatmul.mubr.bf16.gmra.mrb[0].mxu0 %v202
    %v496 = vpop.f32.mrb[0].mxu0
    %v497 = vadd.f32 0.0, %v496
    %v498 = vpop.f32.mrb[0].mxu0
    %v499 = vpop.f32.mrb[0].mxu0
    %v500 = vpop.f32.mrb[0].mxu0
    %501 = vdwg.mxu0
    %502 = vmatprep.subr.bf16.mxu0 0
    %503 = vmatpush1.bf16.msra.mxu0 %v414
    %504 = vmatprep.subr.bf16.mxu0 0
    %505 = vmatpush1.bf16.msra.mxu0 %v415
    %506 = vmatprep.subr.bf16.mxu0 0
    %507 = vmatpush1.bf16.msra.mxu0 %v416
    %508 = vmatprep.subr.bf16.mxu0 0
    %509 = vmatpush1.bf16.msra.mxu0 %v417
    %510 = vmatprep.subr.bf16.mxu0 0
    %511 = vmatpush1.bf16.msra.mxu0 %v418
    %512 = vmatprep.subr.bf16.mxu0 0
    %513 = vmatpush1.bf16.msra.mxu0 %v419
    %514 = vmatprep.subr.bf16.mxu0 0
    %515 = vmatpush1.bf16.msra.mxu0 %v420
    %516 = vmatprep.subr.bf16.mxu0 0
    %517 = vmatpush1.bf16.msra.mxu0 %v421
    %518 = vmatprep.subr.bf16.mxu0 0
    %519 = vmatpush1.bf16.msra.mxu0 %v422
    %520 = vmatprep.subr.bf16.mxu0 0
    %521 = vmatpush1.bf16.msra.mxu0 %v423
    %522 = vmatprep.subr.bf16.mxu0 0
    %523 = vmatpush1.bf16.msra.mxu0 %v424
    %524 = vmatprep.subr.bf16.mxu0 0
    %525 = vmatpush1.bf16.msra.mxu0 %v425
    %526 = vmatprep.subr.bf16.mxu0 0
    %527 = vmatpush1.bf16.msra.mxu0 %v426
    %528 = vmatprep.subr.bf16.mxu0 0
    %529 = vmatpush1.bf16.msra.mxu0 %v427
    %530 = vmatprep.subr.bf16.mxu0 0
    %531 = vmatpush1.bf16.msra.mxu0 %v428
    %532 = vmatprep.subr.bf16.mxu0 0
    %533 = vmatpush1.bf16.msra.mxu0 %v429
    %534 = vmatprep.mubr.bf16.mxu0 %v205
    %535 = vmatmul.mubr.bf16.gmra.mrb[0].mxu0 %v204
    %v536 = vpop.f32.mrb[0].mxu0
    %v537 = vadd.f32 %v497, %v536
    %v538 = vpop.f32.mrb[0].mxu0
    %v539 = vpop.f32.mrb[0].mxu0
    %v540 = vpop.f32.mrb[0].mxu0
    %541 = vdwg.mxu0
    %vm542 = vcmp.gt.f32.partialorder %v537, 0.0
    %v543 = vmul.f32 %v537, 0.2
    %v544 = vsel %vm542, %v537, %v543
    %v545 = vpack.c.bf16 %v544, %v544
    %546 = vst [vmem:[#allocation8] sm:$0xf] %v545
    // Predicated region
    $region26: #{tpu_custom_call.1} parent=1 // pred_check
      _
    $region27: #{tpu_custom_call.1} parent=1 // pred_check_branch
      %548 = sbr.rel (0) target = $region29
    $region28: #{tpu_custom_call.1} parent=1 // pred_region
      %s550 = ssub.s32 64, 64
      %551 = vsyncadd [#allocation4], %s550
      %s553 = sshll.u32 [#allocation8], 4
      %s554 = int_to_ptr.vmem [resolvable:$true] %s553
      %556 = dma.vmem_to_hbm [thread:$0]  %s554, 64, %s3, [#allocation4]
    $region29: #{tpu_custom_call.1} parent=1 // pred_fallthru
      _
    // Predicated region
    $region30: #{tpu_custom_call.1} parent=1 // pred_check
      _
    $region31: #{tpu_custom_call.1} parent=1 // pred_check_branch
      %558 = sbr.rel (0) target = $region33
    $region32: #{tpu_custom_call.1} parent=1 // pred_region
      %559 = dma.done [#allocation4], 64
    $region33: #{tpu_custom_call.1} parent=1 // pred_fallthru
      _
    %560 = vsyncpa [#allocation3], 1
    %561 = vsyncpa [#allocation6], 1
    %562 = vsyncpa [#allocation4], 1

</llo_original>
